<compile_context>
chip_gen: v7x
topology: tpu7x:2x2x1
jax: 0.10.0
libtpu: 0.0.40
codegen_flags: <defaults>
</compile_context>

<pallas_src>
import jax
import jax.numpy as jnp
from jax.experimental import pallas as pl
from jax.experimental.pallas import tpu as pltpu

_CHUNK = 8  # sublane height: rows are retired / stored 8 at a time.


def _round_up(x: int, m: int) -> int:
    return (x + m - 1) // m * m


# --------------------------------------------------------------------------- #
# Fast path: token table resident in VMEM, in-VMEM dynamic-index gather.       #
# --------------------------------------------------------------------------- #
def _make_fast_kernel(ts: int):
    n_chunks = ts // _CHUNK

    def kernel(ids_ref, emb0_ref, pos_ref, out_ref, tok_buf):
        base = pl.program_id(0) * ts

        @pl.loop(0, n_chunks)
        def _(c):
            c0 = pl.multiple_of(c * _CHUNK, _CHUNK)
            for i in range(_CHUNK):                       # static unroll
                r = c0 + i
                tok = ids_ref[base + r]                   # SMEM scalar read
                tok_buf[pl.ds(r, 1), :] = emb0_ref[pl.ds(tok, 1), :]
            rows = pl.ds(c0, _CHUNK)
            out_ref[rows, :] = (
                tok_buf[rows, :].astype(jnp.float32)
                + pos_ref[rows, :].astype(jnp.float32)
            ).astype(out_ref.dtype)

    return kernel


# --------------------------------------------------------------------------- #
# Streaming path: table in HBM, rolling window of per-row gather DMAs.         #
# --------------------------------------------------------------------------- #
def _make_stream_kernel(ts: int, window: int):
    n_chunks = ts // _CHUNK
    w_chunks = window // _CHUNK

    def kernel(ids_ref, emb0_hbm, pos_ref, out_ref, tok_buf, sems):
        base = pl.program_id(0) * ts

        def start_row(r, tok):
            pltpu.make_async_copy(
                emb0_hbm.at[pl.ds(tok, 1), :],
                tok_buf.at[pl.ds(r, 1), :],
                sems.at[r % window],
            ).start()

        def wait_row(r):
            # NOTE: the wait descriptor only needs to match dst / semaphore /
            # transfer size; the source slice is a placeholder with the same
            # shape+dtype as the one used at start() (accepted Mosaic pattern).
            pltpu.make_async_copy(
                emb0_hbm.at[pl.ds(0, 1), :],
                tok_buf.at[pl.ds(r, 1), :],
                sems.at[r % window],
            ).wait()

        # ---- prime the rolling window -------------------------------------
        @pl.loop(0, w_chunks)
        def _(c):
            c0 = pl.multiple_of(c * _CHUNK, _CHUNK)
            for i in range(_CHUNK):                       # static unroll
                r = c0 + i
                start_row(r, ids_ref[base + r])

        # ---- retire one 8-row chunk per iteration, keep the window full ---
        @pl.loop(0, n_chunks)
        def _(c):
            c0 = pl.multiple_of(c * _CHUNK, _CHUNK)
            nxt0 = c0 + window                            # first row to refill

            # Refill-chunk token ids: read from SMEM *before* any DMA wait.
            # The ids array is padded by `window` entries so these reads are
            # always in bounds (values past seq are never used).
            next_toks = [ids_ref[base + nxt0 + i] for i in range(_CHUNK)]

            for i in range(_CHUNK):                       # static unroll
                wait_row(c0 + i)

            @pl.when(nxt0 < ts)
            def _():
                for i in range(_CHUNK):
                    start_row(nxt0 + i, next_toks[i])

            # Dense add + aligned (8, D) store of the retired chunk; overlaps
            # with the gather DMAs of the chunks still in flight.
            rows = pl.ds(c0, _CHUNK)
            out_ref[rows, :] = (
                tok_buf[rows, :].astype(jnp.float32)
                + pos_ref[rows, :].astype(jnp.float32)
            ).astype(out_ref.dtype)

    return kernel


# --------------------------------------------------------------------------- #
# Wrapper                                                                      #
# --------------------------------------------------------------------------- #
def gpt2_embedder(token_ids: jax.Array,
                  emb0: jax.Array,
                  emb1: jax.Array,
                  *,
                  tile_rows: int = 256,
                  max_inflight: int = 32,
                  fast_path_max_table_bytes: int = 8 * 1024 * 1024,
                  fast_path_max_vocab: int = 4096,
                  force_streaming: bool = False) -> jax.Array:
    """token_ids: (seq,) int; emb0/emb1: (vocab, D) -> (seq, D)."""
    seq = int(token_ids.shape[0])
    vocab, d = emb0.shape
    assert seq >= 1
    assert emb1.shape[1] == d
    assert seq <= emb1.shape[0], "sequence longer than position-embedding table"

    # Sublane-dense sequence tiles; aim for >=2 grid steps whenever possible so
    # ("parallel",) can shard the grid across v7x's two TensorCores.
    tile_rows = max(_CHUNK, _round_up(int(tile_rows), _CHUNK))
    ts = min(tile_rows, max(_CHUNK, _round_up(-(-seq // 2), _CHUNK)))
    seq_p = _round_up(seq, ts)
    n_tiles = seq_p // ts

    # Clip ids so no HBM DMA / VMEM index can ever be out of bounds.
    ids = jnp.clip(token_ids.astype(jnp.int32), 0, vocab - 1)

    # Contiguous position rows 0..seq_p-1 (zero-padded if the table is shorter).
    n_pos = emb1.shape[0]
    if seq_p <= n_pos:
        pos_table = jax.lax.slice(emb1, (0, 0), (seq_p, d))
    else:
        pos_table = jnp.pad(emb1, ((0, seq_p - n_pos), (0, 0)))

    out_dtype = jnp.promote_types(emb0.dtype, emb1.dtype)
    table_bytes = vocab * d * jnp.dtype(emb0.dtype).itemsize
    use_fast = (not force_streaming
                and table_bytes <= fast_path_max_table_bytes
                and vocab <= fast_path_max_vocab)

    compiler_params = pltpu.CompilerParams(
        dimension_semantics=("parallel",),        # disjoint output tiles
        vmem_limit_bytes=48 * 1024 * 1024,        # headroom for big tiles / tables
    )

    if use_fast:
        ids_p = jnp.pad(ids, (0, seq_p - seq)) if seq_p != seq else ids
        grid_spec = pltpu.PrefetchScalarGridSpec(
            num_scalar_prefetch=1,                # token ids -> SMEM
            grid=(n_tiles,),
            in_specs=[
                pl.BlockSpec((vocab, d), lambda i, ids_ref: (0, 0)),  # whole table (VMEM resident)
                pl.BlockSpec((ts, d), lambda i, ids_ref: (i, 0)),     # position rows
            ],
            out_specs=pl.BlockSpec((ts, d), lambda i, ids_ref: (i, 0)),
            scratch_shapes=[pltpu.VMEM((ts, d), emb0.dtype)],         # gathered rows
        )
        out = pl.pallas_call(
            _make_fast_kernel(ts),
            grid_spec=grid_spec,
            out_shape=jax.ShapeDtypeStruct((seq_p, d), out_dtype),
            compiler_params=compiler_params,
        )(ids_p, emb0, pos_table)
    else:
        window = max(_CHUNK, (min(max_inflight, ts) // _CHUNK) * _CHUNK)
        # Extra `window` id entries keep the hoisted SMEM pre-reads in bounds.
        ids_p = jnp.pad(ids, (0, (seq_p - seq) + window))
        grid_spec = pltpu.PrefetchScalarGridSpec(
            num_scalar_prefetch=1,                # token ids -> SMEM
            grid=(n_tiles,),
            in_specs=[
                pl.BlockSpec(memory_space=pl.ANY),                    # emb0 stays in HBM
                pl.BlockSpec((ts, d), lambda i, ids_ref: (i, 0)),     # position rows
            ],
            out_specs=pl.BlockSpec((ts, d), lambda i, ids_ref: (i, 0)),
            scratch_shapes=[
                pltpu.VMEM((ts, d), emb0.dtype),                      # gathered token rows
                pltpu.SemaphoreType.DMA((window,)),                   # rolling gather window
            ],
        )
        out = pl.pallas_call(
            _make_stream_kernel(ts, window),
            grid_spec=grid_spec,
            out_shape=jax.ShapeDtypeStruct((seq_p, d), out_dtype),
            compiler_params=compiler_params,
        )(ids_p, emb0, pos_table)

    return out[:seq] if seq_p != seq else out


if __name__ == "__main__":
    # Small synthetic configuration (GPT2Configuration stand-in).
    vocabulary_size = 64
    decoder_dimension = 128
    seq_len = 8

    key = jax.random.PRNGKey(0)
    k_ids, k_e0, k_e1 = jax.random.split(key, 3)

    # nn.Embedding default init: N(0, 1), float32 (matches the PyTorch module).
    emb0 = jax.random.normal(k_e0, (vocabulary_size, decoder_dimension), jnp.float32)
    emb1 = jax.random.normal(k_e1, (vocabulary_size, decoder_dimension), jnp.float32)
    token_ids = jax.random.randint(k_ids, (seq_len,), 0, vocabulary_size, jnp.int32)

    # Reference in plain JAX (same semantics as the PyTorch forward).
    ref = emb0[token_ids] + emb1[jnp.arange(seq_len)]

    # Fast path (table fits in VMEM) — the path this small config takes.
    out_fast = jax.block_until_ready(gpt2_embedder(token_ids, emb0, emb1))
    assert out_fast.shape == (seq_len, decoder_dimension)
    assert jnp.allclose(out_fast, ref, atol=1e-6), "fast path mismatch vs reference"

    # Streaming path (what a real 50257x768 table would use), forced so the
    # HBM rolling-window gather kernel is also exercised.
    out_stream = jax.block_until_ready(
        gpt2_embedder(token_ids, emb0, emb1, force_streaming=True))
    assert out_stream.shape == (seq_len, decoder_dimension)
    assert jnp.allclose(out_stream, ref, atol=1e-6), "streaming path mismatch vs reference"

    print("KERNEL_OK")
</pallas_src>

<mosaic_0001>
module attributes {stable_mosaic.version = 11 : i64} {
  func.func @kernel(%arg0: i32, %arg1: memref<8xi32, #tpu.memory_space<smem>>, %arg2: memref<64x128xf32, #tpu.memory_space<vmem>>, %arg3: memref<8x128xf32, #tpu.memory_space<vmem>>, %arg4: memref<8x128xf32, #tpu.memory_space<vmem>>, %arg5: memref<8x128xf32, #tpu.memory_space<vmem>>) attributes {dimension_semantics = [#tpu.dimension_semantics<parallel>], iteration_bounds = array<i64: 1>, scalar_prefetch = 1 : i64, scratch_operands = 1 : i64, tpu.core_type = #tpu.core_type<tc>, window_params = [{pipeline_mode = #tpu.pipeline_mode<synchronous>, transform_indices = @transform_0, window_bounds = array<i64: 64, 128>}, {transform_indices = @transform_1, window_bounds = array<i64: 8, 128>}, {transform_indices = @transform_2, window_bounds = array<i64: 8, 128>}]} {
    %c8_i32 = arith.constant 8 : i32
    %0 = arith.muli %arg0, %c8_i32 : i32
    %c0_i32 = arith.constant 0 : i32
    %c1_i32 = arith.constant 1 : i32
    %1 = arith.muli %c0_i32, %c1_i32 : i32
    %c0_i32_0 = arith.constant 0 : i32
    %2 = arith.addi %c0_i32_0, %1 : i32
    %c8_i32_1 = arith.constant 8 : i32
    %3 = arith.muli %2, %c8_i32_1 : i32
    %4 = tpu.assume_multiple %3, 8 : i32
    %c0_i32_2 = arith.constant 0 : i32
    %5 = arith.addi %4, %c0_i32_2 : i32
    %6 = arith.addi %0, %5 : i32
    %7 = arith.index_cast %6 : i32 to index
    %8 = memref.load %arg1[%7] : memref<8xi32, #tpu.memory_space<smem>>
    %9 = arith.index_cast %8 : i32 to index
    %c0 = arith.constant 0 : index
    %10 = vector.load %arg2[%9, %c0] : memref<64x128xf32, #tpu.memory_space<vmem>>, vector<1x128xf32>
    %11 = arith.index_cast %5 : i32 to index
    %c0_3 = arith.constant 0 : index
    %12 = vector.load %arg5[%11, %c0_3] : memref<8x128xf32, #tpu.memory_space<vmem>>, vector<1x128xf32>
    tpu.vector_store %arg5[%11, %c0_3], %10 {strides = array<i32>} : memref<8x128xf32, #tpu.memory_space<vmem>>, vector<1x128xf32>,
    %c1_i32_4 = arith.constant 1 : i32
    %13 = arith.addi %4, %c1_i32_4 : i32
    %14 = arith.addi %0, %13 : i32
    %15 = arith.index_cast %14 : i32 to index
    %16 = memref.load %arg1[%15] : memref<8xi32, #tpu.memory_space<smem>>
    %17 = arith.index_cast %16 : i32 to index
    %c0_5 = arith.constant 0 : index
    %18 = vector.load %arg2[%17, %c0_5] : memref<64x128xf32, #tpu.memory_space<vmem>>, vector<1x128xf32>
    %19 = arith.index_cast %13 : i32 to index
    %c0_6 = arith.constant 0 : index
    %20 = vector.load %arg5[%19, %c0_6] : memref<8x128xf32, #tpu.memory_space<vmem>>, vector<1x128xf32>
    tpu.vector_store %arg5[%19, %c0_6], %18 {strides = array<i32>} : memref<8x128xf32, #tpu.memory_space<vmem>>, vector<1x128xf32>,
    %c2_i32 = arith.constant 2 : i32
    %21 = arith.addi %4, %c2_i32 : i32
    %22 = arith.addi %0, %21 : i32
    %23 = arith.index_cast %22 : i32 to index
    %24 = memref.load %arg1[%23] : memref<8xi32, #tpu.memory_space<smem>>
    %25 = arith.index_cast %24 : i32 to index
    %c0_7 = arith.constant 0 : index
    %26 = vector.load %arg2[%25, %c0_7] : memref<64x128xf32, #tpu.memory_space<vmem>>, vector<1x128xf32>
    %27 = arith.index_cast %21 : i32 to index
    %c0_8 = arith.constant 0 : index
    %28 = vector.load %arg5[%27, %c0_8] : memref<8x128xf32, #tpu.memory_space<vmem>>, vector<1x128xf32>
    tpu.vector_store %arg5[%27, %c0_8], %26 {strides = array<i32>} : memref<8x128xf32, #tpu.memory_space<vmem>>, vector<1x128xf32>,
    %c3_i32 = arith.constant 3 : i32
    %29 = arith.addi %4, %c3_i32 : i32
    %30 = arith.addi %0, %29 : i32
    %31 = arith.index_cast %30 : i32 to index
    %32 = memref.load %arg1[%31] : memref<8xi32, #tpu.memory_space<smem>>
    %33 = arith.index_cast %32 : i32 to index
    %c0_9 = arith.constant 0 : index
    %34 = vector.load %arg2[%33, %c0_9] : memref<64x128xf32, #tpu.memory_space<vmem>>, vector<1x128xf32>
    %35 = arith.index_cast %29 : i32 to index
    %c0_10 = arith.constant 0 : index
    %36 = vector.load %arg5[%35, %c0_10] : memref<8x128xf32, #tpu.memory_space<vmem>>, vector<1x128xf32>
    tpu.vector_store %arg5[%35, %c0_10], %34 {strides = array<i32>} : memref<8x128xf32, #tpu.memory_space<vmem>>, vector<1x128xf32>,
    %c4_i32 = arith.constant 4 : i32
    %37 = arith.addi %4, %c4_i32 : i32
    %38 = arith.addi %0, %37 : i32
    %39 = arith.index_cast %38 : i32 to index
    %40 = memref.load %arg1[%39] : memref<8xi32, #tpu.memory_space<smem>>
    %41 = arith.index_cast %40 : i32 to index
    %c0_11 = arith.constant 0 : index
    %42 = vector.load %arg2[%41, %c0_11] : memref<64x128xf32, #tpu.memory_space<vmem>>, vector<1x128xf32>
    %43 = arith.index_cast %37 : i32 to index
    %c0_12 = arith.constant 0 : index
    %44 = vector.load %arg5[%43, %c0_12] : memref<8x128xf32, #tpu.memory_space<vmem>>, vector<1x128xf32>
    tpu.vector_store %arg5[%43, %c0_12], %42 {strides = array<i32>} : memref<8x128xf32, #tpu.memory_space<vmem>>, vector<1x128xf32>,
    %c5_i32 = arith.constant 5 : i32
    %45 = arith.addi %4, %c5_i32 : i32
    %46 = arith.addi %0, %45 : i32
    %47 = arith.index_cast %46 : i32 to index
    %48 = memref.load %arg1[%47] : memref<8xi32, #tpu.memory_space<smem>>
    %49 = arith.index_cast %48 : i32 to index
    %c0_13 = arith.constant 0 : index
    %50 = vector.load %arg2[%49, %c0_13] : memref<64x128xf32, #tpu.memory_space<vmem>>, vector<1x128xf32>
    %51 = arith.index_cast %45 : i32 to index
    %c0_14 = arith.constant 0 : index
    %52 = vector.load %arg5[%51, %c0_14] : memref<8x128xf32, #tpu.memory_space<vmem>>, vector<1x128xf32>
    tpu.vector_store %arg5[%51, %c0_14], %50 {strides = array<i32>} : memref<8x128xf32, #tpu.memory_space<vmem>>, vector<1x128xf32>,
    %c6_i32 = arith.constant 6 : i32
    %53 = arith.addi %4, %c6_i32 : i32
    %54 = arith.addi %0, %53 : i32
    %55 = arith.index_cast %54 : i32 to index
    %56 = memref.load %arg1[%55] : memref<8xi32, #tpu.memory_space<smem>>
    %57 = arith.index_cast %56 : i32 to index
    %c0_15 = arith.constant 0 : index
    %58 = vector.load %arg2[%57, %c0_15] : memref<64x128xf32, #tpu.memory_space<vmem>>, vector<1x128xf32>
    %59 = arith.index_cast %53 : i32 to index
    %c0_16 = arith.constant 0 : index
    %60 = vector.load %arg5[%59, %c0_16] : memref<8x128xf32, #tpu.memory_space<vmem>>, vector<1x128xf32>
    tpu.vector_store %arg5[%59, %c0_16], %58 {strides = array<i32>} : memref<8x128xf32, #tpu.memory_space<vmem>>, vector<1x128xf32>,
    %c7_i32 = arith.constant 7 : i32
    %61 = arith.addi %4, %c7_i32 : i32
    %62 = arith.addi %0, %61 : i32
    %63 = arith.index_cast %62 : i32 to index
    %64 = memref.load %arg1[%63] : memref<8xi32, #tpu.memory_space<smem>>
    %65 = arith.index_cast %64 : i32 to index
    %c0_17 = arith.constant 0 : index
    %66 = vector.load %arg2[%65, %c0_17] : memref<64x128xf32, #tpu.memory_space<vmem>>, vector<1x128xf32>
    %67 = arith.index_cast %61 : i32 to index
    %c0_18 = arith.constant 0 : index
    %68 = vector.load %arg5[%67, %c0_18] : memref<8x128xf32, #tpu.memory_space<vmem>>, vector<1x128xf32>
    tpu.vector_store %arg5[%67, %c0_18], %66 {strides = array<i32>} : memref<8x128xf32, #tpu.memory_space<vmem>>, vector<1x128xf32>,
    %69 = arith.index_cast %4 : i32 to index
    %c0_19 = arith.constant 0 : index
    %70 = vector.load %arg5[%69, %c0_19] : memref<8x128xf32, #tpu.memory_space<vmem>>, vector<8x128xf32>
    %71 = arith.index_cast %4 : i32 to index
    %c0_20 = arith.constant 0 : index
    %72 = vector.load %arg3[%71, %c0_20] : memref<8x128xf32, #tpu.memory_space<vmem>>, vector<8x128xf32>
    %73 = arith.addf %70, %72 : vector<8x128xf32>
    %74 = arith.index_cast %4 : i32 to index
    %c0_21 = arith.constant 0 : index
    %75 = vector.load %arg4[%74, %c0_21] : memref<8x128xf32, #tpu.memory_space<vmem>>, vector<8x128xf32>
    tpu.vector_store %arg4[%74, %c0_21], %73 {strides = array<i32>} : memref<8x128xf32, #tpu.memory_space<vmem>>, vector<8x128xf32>,
    %c1_i32_22 = arith.constant 1 : i32
    return
  }
  func.func @transform_0(%arg0: i32, %arg1: memref<8xi32, #tpu.memory_space<smem>>) -> (i32, i32) {
    %c0_i32 = arith.constant 0 : i32
    %c0_i32_0 = arith.constant 0 : i32
    %c0_i32_1 = arith.constant 0 : i32
    return %c0_i32, %c0_i32_0 : i32, i32
  }
  func.func @transform_1(%arg0: i32, %arg1: memref<8xi32, #tpu.memory_space<smem>>) -> (i32, i32) {
    %c0_i32 = arith.constant 0 : i32
    %c0_i32_0 = arith.constant 0 : i32
    return %arg0, %c0_i32 : i32, i32
  }
  func.func @transform_2(%arg0: i32, %arg1: memref<8xi32, #tpu.memory_space<smem>>) -> (i32, i32) {
    %c0_i32 = arith.constant 0 : i32
    %c0_i32_0 = arith.constant 0 : i32
    return %arg0, %c0_i32 : i32, i32
  }
}

</mosaic_0001>

<llo_original>
// kernel: tpu_custom_call.1
$region0: #{tpu_custom_call.1}
  #allocation0 [shape = 'u32[]', space=smem, size = 0x4, offset = 0x4, fixed_abs, tag = 'smem constant byte address 0x4 - core index']
  #allocation1 [shape = 'u32[144,128]{1,0:T(1,128)}', space=vmem, size = 0x12000, scoped, tag = 'internal scratch']
  #allocation2 [shape = 'f32[8,128]{1,0:T(8,128)}', space=vmem, size = 0x1000, scoped, tag = 'scratch operand']
  #allocation3 [shape = 's32[1]{0}', space=sflag, size = 0x4, scoped, tag = 'scoped memory for tpu_custom_call.1']
  #allocation4 [shape = 'u8[512]{0}', space=smem, size = 0x200, scoped, tag = 'prefetched SMEM operand 0']
  %s0 = inlined_call_operand.hbm [shape: s32[8], index: 0, kind: input, shape index: {}]
  %s1 = inlined_call_operand.hbm [shape: f32[64,128], index: 1, kind: input, shape index: {}]
  %s2 = inlined_call_operand.hbm [shape: f32[8,128], index: 2, kind: input, shape index: {}]
  %s3 = inlined_call_operand.hbm [shape: f32[8,128], index: 3, kind: output, shape index: {}]
  %s4 = sld [smem:[#allocation0]]
  $region26: #{tpu_custom_call.1} parent=0
    _
  %s6 = ssub.s32 1, %s4
  %s7 = scalar_select 0, %s6, %s4
  %9 = dma.hbm_to_smem %s0, 16, [#allocation4], [#allocation3]
  %10 = dma.done [#allocation3], 16
  %11 = sfence
  $region1: #{tpu_custom_call.1} parent=0
    #allocation5 [shape = 'u8[32768]{0}', space=vmem, size = 0x8000, scoped, tag = 'input window, operand 1, single buffered']
    #allocation6 [shape = 's32[1]{0}', space=sflag, size = 0x4, scoped, tag = 'scoped memory for tpu_custom_call.1']
    #allocation7 [shape = 's32[1]{0}', space=sflag, size = 0x4, scoped, tag = 'scoped memory for tpu_custom_call.1']
    #allocation8 [shape = 'u8[4096]{0}', space=vmem, size = 0x1000, scoped, tag = 'input window, operand 2, single buffered']
    #allocation9 [shape = 's32[1]{0}', space=sflag, size = 0x4, scoped, tag = 'scoped memory for tpu_custom_call.1']
    #allocation10 [shape = 'u8[4096]{0}', space=vmem, size = 0x1000, scoped, tag = 'output window, operand 0, single buffered']
    %12 = vsyncpa [#allocation6], 0
    %13 = vsyncpa [#allocation9], 0
    %14 = vsyncpa [#allocation7], 0
    // Predicated region
    $region2: #{tpu_custom_call.1} parent=1 // pred_check
      _
    $region3: #{tpu_custom_call.1} parent=1 // pred_check_branch
      %16 = sbr.rel (0) target = $region5
    $region4: #{tpu_custom_call.1} parent=1 // pred_region
      %s18 = ssub.s32 1024, 1024
      %19 = vsyncadd [#allocation6], %s18
      %s20 = sshll.u32 [#allocation5], 4
      %s21 = int_to_ptr.vmem [resolvable:$true] %s20
      %26 = dma.hbm_to_vmem [thread:$0]  %s1, 1024, %s21, [#allocation6], 128, 128, 8
    $region5: #{tpu_custom_call.1} parent=1 // pred_fallthru
      _
    // Predicated region
    $region6: #{tpu_custom_call.1} parent=1 // pred_check
      _
    $region7: #{tpu_custom_call.1} parent=1 // pred_check_branch
      %28 = sbr.rel (0) target = $region9
    $region8: #{tpu_custom_call.1} parent=1 // pred_region
      %s30 = ssub.s32 128, 128
      %31 = vsyncadd [#allocation9], %s30
      %s33 = sshll.u32 [#allocation8], 4
      %s34 = int_to_ptr.vmem [resolvable:$true] %s33
      %36 = dma.hbm_to_vmem [thread:$0]  %s2, 128, %s34, [#allocation9]
    $region9: #{tpu_custom_call.1} parent=1 // pred_fallthru
      _
    // Predicated region
    $region10: #{tpu_custom_call.1} parent=1 // pred_check
      _
    $region11: #{tpu_custom_call.1} parent=1 // pred_check_branch
      %38 = sbr.rel (0) target = $region13
    $region12: #{tpu_custom_call.1} parent=1 // pred_region
      %39 = dma.done [#allocation6], 1024
    $region13: #{tpu_custom_call.1} parent=1 // pred_fallthru
      _
    // Predicated region
    $region14: #{tpu_custom_call.1} parent=1 // pred_check
      _
    $region15: #{tpu_custom_call.1} parent=1 // pred_check_branch
      %41 = sbr.rel (0) target = $region17
    $region16: #{tpu_custom_call.1} parent=1 // pred_region
      %42 = dma.done [#allocation9], 128
    $region17: #{tpu_custom_call.1} parent=1 // pred_fallthru
      _
    %s43 = smul.u32 0, 8
    %s44 = sadd.s32 %s43, 0
    %s45 = sld [smem:[#allocation4 + %s44]]
    %s46 = scalar_lea.vmem [#allocation5], %s45
    %v47 = vld [vmem:[%s46] sm:$0x1]
    %48 = vst [vmem:[#allocation2] sm:$0x1] %v47
    %s49 = sadd.s32 0, 1
    %s50 = sadd.s32 %s43, %s49
    %s51 = sld [smem:[#allocation4 + %s50]]
    %s52 = scalar_lea.vmem [#allocation5], %s51
    %v53 = vld [vmem:[%s52] sm:$0x1]
    %s54 = scalar_lea.vmem [#allocation2], %s49
    %55 = vst [vmem:[%s54] sm:$0x1] %v53
    %s56 = sadd.s32 0, 2
    %s57 = sadd.s32 %s43, %s56
    %s58 = sld [smem:[#allocation4 + %s57]]
    %s59 = scalar_lea.vmem [#allocation5], %s58
    %v60 = vld [vmem:[%s59] sm:$0x1]
    %s61 = scalar_lea.vmem [#allocation2], %s56
    %62 = vst [vmem:[%s61] sm:$0x1] %v60
    %s63 = sadd.s32 0, 3
    %s64 = sadd.s32 %s43, %s63
    %s65 = sld [smem:[#allocation4 + %s64]]
    %s66 = scalar_lea.vmem [#allocation5], %s65
    %v67 = vld [vmem:[%s66] sm:$0x1]
    %s68 = scalar_lea.vmem [#allocation2], %s63
    %69 = vst [vmem:[%s68] sm:$0x1] %v67
    %s70 = sadd.s32 0, 4
    %s71 = sadd.s32 %s43, %s70
    %s72 = sld [smem:[#allocation4 + %s71]]
    %s73 = scalar_lea.vmem [#allocation5], %s72
    %v74 = vld [vmem:[%s73] sm:$0x1]
    %s75 = scalar_lea.vmem [#allocation2], %s70
    %76 = vst [vmem:[%s75] sm:$0x1] %v74
    %s77 = sadd.s32 0, 5
    %s78 = sadd.s32 %s43, %s77
    %s79 = sld [smem:[#allocation4 + %s78]]
    %s80 = scalar_lea.vmem [#allocation5], %s79
    %v81 = vld [vmem:[%s80] sm:$0x1]
    %s82 = scalar_lea.vmem [#allocation2], %s77
    %83 = vst [vmem:[%s82] sm:$0x1] %v81
    %s84 = sadd.s32 0, 6
    %s85 = sadd.s32 %s43, %s84
    %s86 = sld [smem:[#allocation4 + %s85]]
    %s87 = scalar_lea.vmem [#allocation5], %s86
    %v88 = vld [vmem:[%s87] sm:$0x1]
    %s89 = scalar_lea.vmem [#allocation2], %s84
    %90 = vst [vmem:[%s89] sm:$0x1] %v88
    %s91 = sadd.s32 0, 7
    %s92 = sadd.s32 %s43, %s91
    %s93 = sld [smem:[#allocation4 + %s92]]
    %s94 = scalar_lea.vmem [#allocation5], %s93
    %v95 = vld [vmem:[%s94] sm:$0x1]
    %s96 = scalar_lea.vmem [#allocation2], %s91
    %97 = vst [vmem:[%s96] sm:$0x1] %v95
    %v98 = vld [vmem:[#allocation2] sm:$0xff]
    %v99 = vld [vmem:[#allocation8] sm:$0xff]
    %v100 = vadd.f32 %v98, %v99
    %101 = vst [vmem:[#allocation10] sm:$0xff] %v100
    // Predicated region
    $region18: #{tpu_custom_call.1} parent=1 // pred_check
      _
    $region19: #{tpu_custom_call.1} parent=1 // pred_check_branch
      %103 = sbr.rel (0) target = $region21
    $region20: #{tpu_custom_call.1} parent=1 // pred_region
      %s105 = ssub.s32 128, 128
      %106 = vsyncadd [#allocation7], %s105
      %s108 = sshll.u32 [#allocation10], 4
      %s109 = int_to_ptr.vmem [resolvable:$true] %s108
      %111 = dma.vmem_to_hbm [thread:$0]  %s109, 128, %s3, [#allocation7]
    $region21: #{tpu_custom_call.1} parent=1 // pred_fallthru
      _
    // Predicated region
    $region22: #{tpu_custom_call.1} parent=1 // pred_check
      _
    $region23: #{tpu_custom_call.1} parent=1 // pred_check_branch
      %113 = sbr.rel (0) target = $region25
    $region24: #{tpu_custom_call.1} parent=1 // pred_region
      %114 = dma.done [#allocation7], 128
    $region25: #{tpu_custom_call.1} parent=1 // pred_fallthru
      _
    %115 = vsyncpa [#allocation6], 1
    %116 = vsyncpa [#allocation9], 1
    %117 = vsyncpa [#allocation7], 1

</llo_original>
